<compile_context>
chip_gen: v7x
topology: tpu7x:2x2x1
jax: 0.10.0
libtpu: 0.0.40
codegen_flags: <defaults>
</compile_context>

<pallas_src>
import functools

import jax
import jax.numpy as jnp
from jax.experimental import pallas as pl
from jax.experimental.pallas import tpu as pltpu


LANE = 128


def _round_up(x, m):
    return ((x + m - 1) // m) * m


# ----------------------------------------------------------------------------
# Kernel 1: Q/K/V projections (1x1 convs == per-pixel matmuls over channels).
# ----------------------------------------------------------------------------
def _qkv_proj_kernel(x_ref, wq_ref, bq_ref, wk_ref, bk_ref, wv_ref, bv_ref,
                     q_ref, k_ref, v_ref):
    # x_ref: (1, blk, Cp) f32 ; weights bf16 ; biases f32 (padded lane-dense).
    x = x_ref[0].astype(jnp.bfloat16)                                   # (blk, Cp)
    q = jnp.dot(x, wq_ref[...], preferred_element_type=jnp.float32) + bq_ref[...]
    k = jnp.dot(x, wk_ref[...], preferred_element_type=jnp.float32) + bk_ref[...]
    v = jnp.dot(x, wv_ref[...], preferred_element_type=jnp.float32) + bv_ref[...]
    q_ref[0] = q.astype(q_ref.dtype)
    k_ref[0] = k.astype(k_ref.dtype)
    v_ref[0] = v.astype(v_ref.dtype)


# ----------------------------------------------------------------------------
# Kernel 2: flash attention with online softmax + fused gamma*out + x residual.
# ----------------------------------------------------------------------------
def _flash_attn_kernel(q_ref, k_ref, v_ref, x_ref, gamma_ref, o_ref,
                       m_ref, l_ref, acc_ref, *, n_valid, blk_k, mask_needed):
    ki = pl.program_id(2)

    @pl.when(ki == 0)
    def _init():
        m_ref[...] = jnp.full(m_ref.shape, -jnp.inf, m_ref.dtype)
        l_ref[...] = jnp.zeros(l_ref.shape, l_ref.dtype)
        acc_ref[...] = jnp.zeros(acc_ref.shape, acc_ref.dtype)

    q = q_ref[0]                                                        # (blk_q, C8p) bf16
    k = k_ref[0]                                                        # (blk_k, C8p) bf16
    # energy[i, j] = <q_i, k_j>  (== torch.bmm(q^T, k) in channel-first layout)
    s = jax.lax.dot_general(q, k, (((1,), (1,)), ((), ())),
                            preferred_element_type=jnp.float32)         # (blk_q, blk_k) f32

    if mask_needed:  # static: only emitted when N was padded up to Np
        col = ki * blk_k + jax.lax.broadcasted_iota(jnp.int32, s.shape, 1)
        s = jnp.where(col < n_valid, s, -1e30)

    m_prev = m_ref[...]
    m_new = jnp.maximum(m_prev, jnp.max(s, axis=-1, keepdims=True))
    alpha = jnp.exp(m_prev - m_new)
    p = jnp.exp(s - m_new)
    l_ref[...] = alpha * l_ref[...] + jnp.sum(p, axis=-1, keepdims=True)
    acc_ref[...] = alpha * acc_ref[...] + jnp.dot(
        p.astype(jnp.bfloat16), v_ref[0], preferred_element_type=jnp.float32)
    m_ref[...] = m_new

    @pl.when(ki == pl.num_programs(2) - 1)
    def _finalize():
        gamma = gamma_ref[0, 0]                                         # SMEM scalar
        out = acc_ref[...] * pl.reciprocal(l_ref[...], approx=True)     # (blk_q, Cp)
        o_ref[0] = (gamma * out + x_ref[0]).astype(o_ref.dtype)


# ----------------------------------------------------------------------------
# Wrapper: NCHW -> padded channel-last -> projections -> flash attention -> NCHW
# ----------------------------------------------------------------------------
def self_attention(x_nchw, params, *, block_size=256):
    """x_nchw: (B, C, H, W) float32, C >= 8. Returns (B, C, H, W) float32."""
    B, C, H, W = x_nchw.shape
    assert C >= 8, "SelfAttention requires in_channels >= 8 (C // 8 >= 1)"
    N = H * W
    C8 = C // 8

    C8p = _round_up(C8, LANE)               # lane-dense q/k channel dim
    Cp = _round_up(C, LANE)                 # lane-dense v / output channel dim
    blk = min(block_size, _round_up(N, LANE))
    Np = _round_up(N, blk)

    f32, bf16 = jnp.float32, jnp.bfloat16

    # NCHW -> (B, N, C), zero-pad sequence and channels.
    x_bnc = jnp.transpose(x_nchw.reshape(B, C, N), (0, 2, 1)).astype(f32)
    x_pad = jnp.pad(x_bnc, ((0, 0), (0, Np - N), (0, Cp - C)))          # (B, Np, Cp) f32

    # Conv weights (out, in) -> (in, out), zero-padded; bf16 for the MXU.
    wq = jnp.pad(params["wq"].T, ((0, Cp - C), (0, C8p - C8))).astype(bf16)
    wk = jnp.pad(params["wk"].T, ((0, Cp - C), (0, C8p - C8))).astype(bf16)
    wv = jnp.pad(params["wv"].T, ((0, Cp - C), (0, Cp - C))).astype(bf16)
    bq = jnp.pad(params["bq"], (0, C8p - C8)).reshape(1, C8p).astype(f32)
    bk = jnp.pad(params["bk"], (0, C8p - C8)).reshape(1, C8p).astype(f32)
    bv = jnp.pad(params["bv"], (0, Cp - C)).reshape(1, Cp).astype(f32)
    gamma = params["gamma"].reshape(1, 1).astype(f32)

    n_row_tiles = Np // blk

    # ---- pass 1: Q/K/V projections (hoisted out of the attention loop) ----
    row_map = lambda b, r: (b, r, 0)
    const_map = lambda b, r: (0, 0)
    q_p, k_p, v_p = pl.pallas_call(
        _qkv_proj_kernel,
        out_shape=(
            jax.ShapeDtypeStruct((B, Np, C8p), bf16),
            jax.ShapeDtypeStruct((B, Np, C8p), bf16),
            jax.ShapeDtypeStruct((B, Np, Cp), bf16),
        ),
        grid_spec=pltpu.PrefetchScalarGridSpec(
            num_scalar_prefetch=0,
            grid=(B, n_row_tiles),
            in_specs=[
                pl.BlockSpec((1, blk, Cp), row_map),     # x
                pl.BlockSpec((Cp, C8p), const_map),      # Wq^T
                pl.BlockSpec((1, C8p), const_map),       # bq
                pl.BlockSpec((Cp, C8p), const_map),      # Wk^T
                pl.BlockSpec((1, C8p), const_map),       # bk
                pl.BlockSpec((Cp, Cp), const_map),       # Wv^T
                pl.BlockSpec((1, Cp), const_map),        # bv
            ],
            out_specs=[
                pl.BlockSpec((1, blk, C8p), row_map),    # q
                pl.BlockSpec((1, blk, C8p), row_map),    # k
                pl.BlockSpec((1, blk, Cp), row_map),     # v
            ],
        ),
        compiler_params=pltpu.CompilerParams(
            dimension_semantics=("parallel", "parallel")),
    )(x_pad, wq, bq, wk, bk, wv, bv)

    # ---- pass 2: flash attention over (B, q-tiles, kv-tiles) ----
    q_map = lambda b, qi, ki: (b, qi, 0)
    kv_map = lambda b, qi, ki: (b, ki, 0)
    flash = functools.partial(
        _flash_attn_kernel, n_valid=N, blk_k=blk, mask_needed=(Np != N))

    out_pad = pl.pallas_call(
        flash,
        out_shape=jax.ShapeDtypeStruct((B, Np, Cp), f32),
        grid_spec=pltpu.PrefetchScalarGridSpec(
            num_scalar_prefetch=0,
            grid=(B, n_row_tiles, n_row_tiles),
            in_specs=[
                pl.BlockSpec((1, blk, C8p), q_map),      # q
                pl.BlockSpec((1, blk, C8p), kv_map),     # k
                pl.BlockSpec((1, blk, Cp), kv_map),      # v
                pl.BlockSpec((1, blk, Cp), q_map),       # x (residual)
                pl.BlockSpec(memory_space=pltpu.MemorySpace.SMEM),  # gamma scalar
            ],
            out_specs=pl.BlockSpec((1, blk, Cp), q_map),
            scratch_shapes=[
                pltpu.VMEM((blk, 1), f32),               # running max m
                pltpu.VMEM((blk, 1), f32),               # running denom l
                pltpu.VMEM((blk, Cp), f32),              # output accumulator
            ],
        ),
        compiler_params=pltpu.CompilerParams(
            dimension_semantics=("parallel", "parallel", "arbitrary")),
    )(q_p, k_p, v_p, x_pad, gamma)

    # Strip padding, back to NCHW.
    out_bnc = out_pad[:, :N, :C]
    return jnp.transpose(out_bnc, (0, 2, 1)).reshape(B, C, H, W)


# ----------------------------------------------------------------------------
# Parameter init (matches the torch module's parameter shapes; gamma init = 0)
# ----------------------------------------------------------------------------
def init_params(key, in_channels):
    C = in_channels
    C8 = C // 8
    k_q, k_k, k_v, k_bq, k_bk, k_bv = jax.random.split(key, 6)
    scale = 1.0 / jnp.sqrt(C)
    return {
        "wq": jax.random.uniform(k_q, (C8, C), jnp.float32, -scale, scale),
        "bq": jax.random.uniform(k_bq, (C8,), jnp.float32, -scale, scale),
        "wk": jax.random.uniform(k_k, (C8, C), jnp.float32, -scale, scale),
        "bk": jax.random.uniform(k_bk, (C8,), jnp.float32, -scale, scale),
        "wv": jax.random.uniform(k_v, (C, C), jnp.float32, -scale, scale),
        "bv": jax.random.uniform(k_bv, (C,), jnp.float32, -scale, scale),
        "gamma": jnp.zeros((1,), jnp.float32),
    }


# Pure-JAX reference mirroring the torch forward exactly (f32 end-to-end).
def _reference(x_nchw, params):
    B, C, H, W = x_nchw.shape
    N = H * W
    x = x_nchw.reshape(B, C, N)
    q = jnp.einsum("oc,bcn->bon", params["wq"], x) + params["bq"][None, :, None]
    k = jnp.einsum("oc,bcn->bon", params["wk"], x) + params["bk"][None, :, None]
    v = jnp.einsum("oc,bcn->bon", params["wv"], x) + params["bv"][None, :, None]
    energy = jnp.einsum("bci,bcj->bij", q, k)            # bmm(q^T, k)
    attn = jax.nn.softmax(energy, axis=-1)
    out = jnp.einsum("bcn,bjn->bcj", v, attn)            # bmm(v, attn^T)
    return params["gamma"][0] * out.reshape(B, C, H, W) + x_nchw


if __name__ == "__main__":
    key = jax.random.PRNGKey(0)
    k_x, k_p, k_x2 = jax.random.split(key, 3)

    B, C, H, W = 2, 16, 8, 8            # C must be >= 8 so that C // 8 >= 1
    params = init_params(k_p, C)
    # gamma initializes to 0 in the module (out == x); use a nonzero value here
    # so the attention path is actually exercised by the numerical check.
    params["gamma"] = jnp.array([0.8], jnp.float32)

    # Test 1: small feature map (single-tile path).
    x = jax.random.normal(k_x, (B, C, H, W), jnp.float32)
    out = self_attention(x, params)
    jax.block_until_ready(out)
    assert out.shape == (B, C, H, W)
    err = float(jnp.max(jnp.abs(out - _reference(x, params))))
    assert err < 1e-1, f"max abs err {err}"

    # Test 2: non-tile-aligned spatial size -> multi-tile flash path + kv masking
    # (N = 400 padded to 512, 2x2 q/kv tiles of 256).
    x2 = jax.random.normal(k_x2, (B, C, 20, 20), jnp.float32)
    out2 = self_attention(x2, params, block_size=256)
    jax.block_until_ready(out2)
    assert out2.shape == (B, C, 20, 20)
    err2 = float(jnp.max(jnp.abs(out2 - _reference(x2, params))))
    assert err2 < 1e-1, f"max abs err {err2}"

    print("KERNEL_OK")
</pallas_src>

<mosaic_0001>
module attributes {stable_mosaic.version = 11 : i64} {
  func.func @_qkv_proj_kernel(%arg0: i32, %arg1: i32, %arg2: memref<1x128x128xf32, #tpu.memory_space<vmem>>, %arg3: memref<128x128xbf16, #tpu.memory_space<vmem>>, %arg4: memref<1x128xf32, #tpu.memory_space<vmem>>, %arg5: memref<128x128xbf16, #tpu.memory_space<vmem>>, %arg6: memref<1x128xf32, #tpu.memory_space<vmem>>, %arg7: memref<128x128xbf16, #tpu.memory_space<vmem>>, %arg8: memref<1x128xf32, #tpu.memory_space<vmem>>, %arg9: memref<1x128x128xbf16, #tpu.memory_space<vmem>>, %arg10: memref<1x128x128xbf16, #tpu.memory_space<vmem>>, %arg11: memref<1x128x128xbf16, #tpu.memory_space<vmem>>) attributes {dimension_semantics = [#tpu.dimension_semantics<parallel>, #tpu.dimension_semantics<parallel>], iteration_bounds = array<i64: 2, 1>, scalar_prefetch = 0 : i64, scratch_operands = 0 : i64, tpu.core_type = #tpu.core_type<tc>, window_params = [{transform_indices = @transform_0, window_bounds = array<i64: 1, 128, 128>}, {pipeline_mode = #tpu.pipeline_mode<synchronous>, transform_indices = @transform_1, window_bounds = array<i64: 128, 128>}, {pipeline_mode = #tpu.pipeline_mode<synchronous>, transform_indices = @transform_2, window_bounds = array<i64: 1, 128>}, {pipeline_mode = #tpu.pipeline_mode<synchronous>, transform_indices = @transform_3, window_bounds = array<i64: 128, 128>}, {pipeline_mode = #tpu.pipeline_mode<synchronous>, transform_indices = @transform_4, window_bounds = array<i64: 1, 128>}, {pipeline_mode = #tpu.pipeline_mode<synchronous>, transform_indices = @transform_5, window_bounds = array<i64: 128, 128>}, {pipeline_mode = #tpu.pipeline_mode<synchronous>, transform_indices = @transform_6, window_bounds = array<i64: 1, 128>}, {transform_indices = @transform_7, window_bounds = array<i64: 1, 128, 128>}, {transform_indices = @transform_8, window_bounds = array<i64: 1, 128, 128>}, {transform_indices = @transform_9, window_bounds = array<i64: 1, 128, 128>}]} {
    %c0 = arith.constant 0 : index
    %c0_0 = arith.constant 0 : index
    %c0_1 = arith.constant 0 : index
    %0 = vector.load %arg2[%c0, %c0_0, %c0_1] : memref<1x128x128xf32, #tpu.memory_space<vmem>>, vector<1x128x128xf32>
    %1 = vector.shape_cast %0 : vector<1x128x128xf32> to vector<128x128xf32>
    %2 = arith.truncf %1 : vector<128x128xf32> to vector<128x128xbf16>
    %c0_2 = arith.constant 0 : index
    %c0_3 = arith.constant 0 : index
    %3 = vector.load %arg3[%c0_2, %c0_3] : memref<128x128xbf16, #tpu.memory_space<vmem>>, vector<128x128xbf16>
    %cst = arith.constant dense<0.000000e+00> : vector<128x128xf32>
    %4 = tpu.matmul %2, %3, %cst {dimension_numbers = #tpu.dot_dimension_numbers<[1], [0], [0], [1], [0, 0, 1, 1], [], []>} : vector<128x128xbf16>, vector<128x128xbf16>, vector<128x128xf32> -> vector<128x128xf32>
    %c0_4 = arith.constant 0 : index
    %c0_5 = arith.constant 0 : index
    %5 = vector.load %arg4[%c0_4, %c0_5] : memref<1x128xf32, #tpu.memory_space<vmem>>, vector<1x128xf32>
    %6 = vector.broadcast %5 : vector<1x128xf32> to vector<128x128xf32>
    %7 = arith.addf %4, %6 : vector<128x128xf32>
    %c0_6 = arith.constant 0 : index
    %c0_7 = arith.constant 0 : index
    %8 = vector.load %arg5[%c0_6, %c0_7] : memref<128x128xbf16, #tpu.memory_space<vmem>>, vector<128x128xbf16>
    %cst_8 = arith.constant dense<0.000000e+00> : vector<128x128xf32>
    %9 = tpu.matmul %2, %8, %cst_8 {dimension_numbers = #tpu.dot_dimension_numbers<[1], [0], [0], [1], [0, 0, 1, 1], [], []>} : vector<128x128xbf16>, vector<128x128xbf16>, vector<128x128xf32> -> vector<128x128xf32>
    %c0_9 = arith.constant 0 : index
    %c0_10 = arith.constant 0 : index
    %10 = vector.load %arg6[%c0_9, %c0_10] : memref<1x128xf32, #tpu.memory_space<vmem>>, vector<1x128xf32>
    %11 = vector.broadcast %10 : vector<1x128xf32> to vector<128x128xf32>
    %12 = arith.addf %9, %11 : vector<128x128xf32>
    %c0_11 = arith.constant 0 : index
    %c0_12 = arith.constant 0 : index
    %13 = vector.load %arg7[%c0_11, %c0_12] : memref<128x128xbf16, #tpu.memory_space<vmem>>, vector<128x128xbf16>
    %cst_13 = arith.constant dense<0.000000e+00> : vector<128x128xf32>
    %14 = tpu.matmul %2, %13, %cst_13 {dimension_numbers = #tpu.dot_dimension_numbers<[1], [0], [0], [1], [0, 0, 1, 1], [], []>} : vector<128x128xbf16>, vector<128x128xbf16>, vector<128x128xf32> -> vector<128x128xf32>
    %c0_14 = arith.constant 0 : index
    %c0_15 = arith.constant 0 : index
    %15 = vector.load %arg8[%c0_14, %c0_15] : memref<1x128xf32, #tpu.memory_space<vmem>>, vector<1x128xf32>
    %16 = vector.broadcast %15 : vector<1x128xf32> to vector<128x128xf32>
    %17 = arith.addf %14, %16 : vector<128x128xf32>
    %18 = arith.truncf %7 : vector<128x128xf32> to vector<128x128xbf16>
    %c0_16 = arith.constant 0 : index
    %c0_17 = arith.constant 0 : index
    %c0_18 = arith.constant 0 : index
    %19 = vector.load %arg9[%c0_16, %c0_17, %c0_18] : memref<1x128x128xbf16, #tpu.memory_space<vmem>>, vector<1x128x128xbf16>
    %20 = vector.shape_cast %19 : vector<1x128x128xbf16> to vector<128x128xbf16>
    %21 = vector.shape_cast %18 : vector<128x128xbf16> to vector<1x128x128xbf16>
    tpu.vector_store %arg9[%c0_16, %c0_17, %c0_18], %21 {strides = array<i32>} : memref<1x128x128xbf16, #tpu.memory_space<vmem>>, vector<1x128x128xbf16>,
    %22 = arith.truncf %12 : vector<128x128xf32> to vector<128x128xbf16>
    %c0_19 = arith.constant 0 : index
    %c0_20 = arith.constant 0 : index
    %c0_21 = arith.constant 0 : index
    %23 = vector.load %arg10[%c0_19, %c0_20, %c0_21] : memref<1x128x128xbf16, #tpu.memory_space<vmem>>, vector<1x128x128xbf16>
    %24 = vector.shape_cast %23 : vector<1x128x128xbf16> to vector<128x128xbf16>
    %25 = vector.shape_cast %22 : vector<128x128xbf16> to vector<1x128x128xbf16>
    tpu.vector_store %arg10[%c0_19, %c0_20, %c0_21], %25 {strides = array<i32>} : memref<1x128x128xbf16, #tpu.memory_space<vmem>>, vector<1x128x128xbf16>,
    %26 = arith.truncf %17 : vector<128x128xf32> to vector<128x128xbf16>
    %c0_22 = arith.constant 0 : index
    %c0_23 = arith.constant 0 : index
    %c0_24 = arith.constant 0 : index
    %27 = vector.load %arg11[%c0_22, %c0_23, %c0_24] : memref<1x128x128xbf16, #tpu.memory_space<vmem>>, vector<1x128x128xbf16>
    %28 = vector.shape_cast %27 : vector<1x128x128xbf16> to vector<128x128xbf16>
    %29 = vector.shape_cast %26 : vector<128x128xbf16> to vector<1x128x128xbf16>
    tpu.vector_store %arg11[%c0_22, %c0_23, %c0_24], %29 {strides = array<i32>} : memref<1x128x128xbf16, #tpu.memory_space<vmem>>, vector<1x128x128xbf16>,
    return
  }
  func.func @transform_0(%arg0: i32, %arg1: i32) -> (i32, i32, i32) {
    %c0_i32 = arith.constant 0 : i32
    %c0_i32_0 = arith.constant 0 : i32
    return %arg0, %arg1, %c0_i32 : i32, i32, i32
  }
  func.func @transform_1(%arg0: i32, %arg1: i32) -> (i32, i32) {
    %c0_i32 = arith.constant 0 : i32
    %c0_i32_0 = arith.constant 0 : i32
    %c0_i32_1 = arith.constant 0 : i32
    return %c0_i32, %c0_i32_0 : i32, i32
  }
  func.func @transform_2(%arg0: i32, %arg1: i32) -> (i32, i32) {
    %c0_i32 = arith.constant 0 : i32
    %c0_i32_0 = arith.constant 0 : i32
    %c0_i32_1 = arith.constant 0 : i32
    return %c0_i32, %c0_i32_0 : i32, i32
  }
  func.func @transform_3(%arg0: i32, %arg1: i32) -> (i32, i32) {
    %c0_i32 = arith.constant 0 : i32
    %c0_i32_0 = arith.constant 0 : i32
    %c0_i32_1 = arith.constant 0 : i32
    return %c0_i32, %c0_i32_0 : i32, i32
  }
  func.func @transform_4(%arg0: i32, %arg1: i32) -> (i32, i32) {
    %c0_i32 = arith.constant 0 : i32
    %c0_i32_0 = arith.constant 0 : i32
    %c0_i32_1 = arith.constant 0 : i32
    return %c0_i32, %c0_i32_0 : i32, i32
  }
  func.func @transform_5(%arg0: i32, %arg1: i32) -> (i32, i32) {
    %c0_i32 = arith.constant 0 : i32
    %c0_i32_0 = arith.constant 0 : i32
    %c0_i32_1 = arith.constant 0 : i32
    return %c0_i32, %c0_i32_0 : i32, i32
  }
  func.func @transform_6(%arg0: i32, %arg1: i32) -> (i32, i32) {
    %c0_i32 = arith.constant 0 : i32
    %c0_i32_0 = arith.constant 0 : i32
    %c0_i32_1 = arith.constant 0 : i32
    return %c0_i32, %c0_i32_0 : i32, i32
  }
  func.func @transform_7(%arg0: i32, %arg1: i32) -> (i32, i32, i32) {
    %c0_i32 = arith.constant 0 : i32
    %c0_i32_0 = arith.constant 0 : i32
    return %arg0, %arg1, %c0_i32 : i32, i32, i32
  }
  func.func @transform_8(%arg0: i32, %arg1: i32) -> (i32, i32, i32) {
    %c0_i32 = arith.constant 0 : i32
    %c0_i32_0 = arith.constant 0 : i32
    return %arg0, %arg1, %c0_i32 : i32, i32, i32
  }
  func.func @transform_9(%arg0: i32, %arg1: i32) -> (i32, i32, i32) {
    %c0_i32 = arith.constant 0 : i32
    %c0_i32_0 = arith.constant 0 : i32
    return %arg0, %arg1, %c0_i32 : i32, i32, i32
  }
}

</mosaic_0001>

<llo_original>
// kernel: tpu_custom_call.1
$region0: #{tpu_custom_call.1}
  #allocation0 [shape = 'u32[]', space=smem, size = 0x4, offset = 0x4, fixed_abs, tag = 'smem constant byte address 0x4 - core index']
  #allocation1 [shape = 'u32[144,128]{1,0:T(1,128)}', space=vmem, size = 0x12000, scoped, tag = 'internal scratch']
  %s0 = inlined_call_operand.hbm [shape: f32[2,128,128], index: 0, kind: input, shape index: {}]
  %s1 = inlined_call_operand.hbm [shape: bf16[128,128], index: 1, kind: input, shape index: {}]
  %s2 = inlined_call_operand.vmem [shape: f32[1,128], index: 2, kind: input, shape index: {}]
  %s3 = inlined_call_operand.hbm [shape: bf16[128,128], index: 3, kind: input, shape index: {}]
  %s4 = inlined_call_operand.vmem [shape: f32[1,128], index: 4, kind: input, shape index: {}]
  %s5 = inlined_call_operand.hbm [shape: bf16[128,128], index: 5, kind: input, shape index: {}]
  %s6 = inlined_call_operand.vmem [shape: f32[1,128], index: 6, kind: input, shape index: {}]
  %s7 = inlined_call_operand.hbm [shape: bf16[2,128,128], index: 7, kind: output, shape index: {0}]
  %s8 = inlined_call_operand.hbm [shape: bf16[2,128,128], index: 8, kind: output, shape index: {1}]
  %s9 = inlined_call_operand.hbm [shape: bf16[2,128,128], index: 9, kind: output, shape index: {2}]
  %10 = xla_tuple %s7, %s8, %s9
  %s11 = sld [smem:[#allocation0]]
  $region93: #{tpu_custom_call.1} parent=0
    _
  %s13 = ssub.s32 1, %s11
  %s14 = scalar_select 0, %s13, %s11
  $region1: #{tpu_custom_call.1} parent=0
    #allocation2 [shape = 'u8[131072]{0}', space=vmem, size = 0x20000, scoped, tag = 'input window, operand 0']
    #allocation3 [shape = 's32[2]{0}', space=sflag, size = 0x8, scoped, tag = 'scoped memory for tpu_custom_call.1']
    #allocation4 [shape = 's32[2]{0}', space=sflag, size = 0x8, scoped, tag = 'scoped memory for tpu_custom_call.1']
    #allocation5 [shape = 'u8[32768]{0}', space=vmem, size = 0x8000, scoped, tag = 'input window, operand 1, single buffered']
    #allocation6 [shape = 's32[1]{0}', space=sflag, size = 0x4, scoped, tag = 'scoped memory for tpu_custom_call.1']
    #allocation7 [shape = 'u8[32768]{0}', space=vmem, size = 0x8000, scoped, tag = 'input window, operand 3, single buffered']
    #allocation8 [shape = 'u8[32768]{0}', space=vmem, size = 0x8000, scoped, tag = 'input window, operand 5, single buffered']
    #allocation9 [shape = 's32[1]{0}', space=sflag, size = 0x4, scoped, tag = 'scoped memory for tpu_custom_call.1']
    #allocation10 [shape = 'u8[65536]{0}', space=vmem, size = 0x10000, scoped, tag = 'output window, operand 0']
    #allocation11 [shape = 'u8[65536]{0}', space=vmem, size = 0x10000, scoped, tag = 'output window, operand 1']
    #allocation12 [shape = 's32[2]{0}', space=sflag, size = 0x8, scoped, tag = 'scoped memory for tpu_custom_call.1']
    #allocation13 [shape = 'u8[65536]{0}', space=vmem, size = 0x10000, scoped, tag = 'output window, operand 2']
    %15 = vsyncpa [#allocation3], 0
    %s16 = scalar_lea.sflag [#allocation3], 1
    %17 = vsyncpa %s16, 0
    %18 = vsyncpa [#allocation6], 0
    %19 = vsyncpa [#allocation9], 0
    %20 = vsyncpa [#allocation4], 0
    %s21 = scalar_lea.sflag [#allocation4], 1
    %22 = vsyncpa %s21, 0
    %23 = vsyncpa [#allocation12], 0
    %s24 = scalar_lea.sflag [#allocation12], 1
    %25 = vsyncpa %s24, 0
    loop: start=0, step=1, limit=4
    $region2: #{tpu_custom_call.1} parent=1 // loop_pre_header
      _
    $region3: #{tpu_custom_call.1} parent=1 // loop_header
      %s27 = sphi 0, %s31
      %p28 = scmp.ge.s32.totalorder %s27, 4
      %s34 = sphi 0, %s46
      %s35 = sphi 0, %s42
      %s36 = sphi 0, %s34
      %s37 = sphi 0, %s35
      %s38 = sphi 0, %s36
      %s39 = sphi 0, %s37
      %s51 = sphi 0, %s53
      %s54 = sphi 0, %s51
      %s55 = sphi 0, %s54
      %s71 = sphi 0, %s55
      %s75 = sphi 0, %s75
      %s77 = sphi 0, %s75
      %s78 = sphi 0, %s77
      %s92 = sphi 0, %s78
      %s96 = sphi 0, %s96
      %s98 = sphi 0, %s96
      %s99 = sphi 0, %s98
      %s113 = sphi 0, %s99
      %s117 = sphi 0, %s117
      %s119 = sphi 0, %s117
      %s120 = sphi 0, %s119
      %s134 = sphi 0, %s120
      %s138 = sphi 0, %s138
      %s140 = sphi 0, %s138
      %s141 = sphi 0, %s140
      %s155 = sphi 0, %s141
      %s159 = sphi 0, %s159
      %s161 = sphi 0, %s159
      %s162 = sphi 0, %s161
      %s176 = sphi 0, %s162
      %s180 = sphi 0, %s180
      %s182 = sphi 0, %s180
      %s183 = sphi 0, %s182
      %s197 = sphi 0, %s183
      %s205 = sphi 0, %s207
      %s208 = sphi 0, %s205
      %s209 = sphi 0, %s208
      %s225 = sphi 0, %s209
      %s233 = sphi 0, %s235
      %s236 = sphi 0, %s233
      %s237 = sphi 0, %s236
      %s253 = sphi 0, %s237
      %s261 = sphi 0, %s263
      %s264 = sphi 0, %s261
      %s265 = sphi 0, %s264
      %s281 = sphi 0, %s265
    $region4: #{tpu_custom_call.1} parent=1 // loop_header_branch
      %30 = sbr.rel (%p28) target = $region8
    $region5: #{tpu_custom_call.1} parent=1 // loop_body
      %s32 = ssub.s32 %s27, 1
      %s33 = ssub.s32 %s27, 2
      %s40 = sadd.s32 1, %s35
      %p41 = scmp.ge.s32.totalorder %s40, 1
      %s42 = scalar_select %p41, 0, %s40
      %s43 = sadd.s32 1, %s34
      %s44 = scalar_select %p41, %s43, %s34
      %p45 = scmp.ge.s32.totalorder %s44, 2
      %s46 = scalar_select %p45, 0, %s44
      %s47 = ssub.s32 %s34, %s46
      %s48 = ssub.s32 %s35, %s42
      %s49 = sor.u32 %s47, %s48
      %p50 = scmp.eq.s32.totalorder %s49, 0
      %s52 = sadd.s32 %s51, 1
      %s53 = scalar_select %p50, %s51, %s52
      %p56 = pneg %p50
      %p57 = scmp.eq.s32.totalorder %s27, 1
      %p58 = por %p56, %p57
      %p59 = scmp.ne.s32.totalorder %s51, %s54
      %p60 = scmp.eq.s32.totalorder %s27, 0
      %p61 = por %p59, %p60
      %p62 = scmp.ne.s32.totalorder %s51, %s54
      %p63 = scmp.eq.s32.totalorder %s32, 1
      %p64 = por %p62, %p63
      %p65 = scmp.ne.s32.totalorder %s54, %s55
      %p66 = scmp.eq.s32.totalorder %s32, 0
      %p67 = por %p65, %p66
      %p68 = scmp.ne.s32.totalorder %s54, %s55
      %p69 = scmp.eq.s32.totalorder %s33, 1
      %p70 = por %p68, %p69
      %p72 = scmp.ne.s32.totalorder %s55, %s71
      %p73 = scmp.eq.s32.totalorder %s33, 0
      %p74 = por %p72, %p73
      %s76 = sadd.s32 %s75, 1
      %p79 = scmp.eq.s32.totalorder %s27, 1
      %p80 = scmp.ne.s32.totalorder %s75, %s77
      %p81 = scmp.eq.s32.totalorder %s27, 0
      %p82 = por %p80, %p81
      %p83 = scmp.ne.s32.totalorder %s75, %s77
      %p84 = scmp.eq.s32.totalorder %s32, 1
      %p85 = por %p83, %p84
      %p86 = scmp.ne.s32.totalorder %s77, %s78
      %p87 = scmp.eq.s32.totalorder %s32, 0
      %p88 = por %p86, %p87
      %p89 = scmp.ne.s32.totalorder %s77, %s78
      %p90 = scmp.eq.s32.totalorder %s33, 1
      %p91 = por %p89, %p90
      %p93 = scmp.ne.s32.totalorder %s78, %s92
      %p94 = scmp.eq.s32.totalorder %s33, 0
      %p95 = por %p93, %p94
      %s97 = sadd.s32 %s96, 1
      %p100 = scmp.eq.s32.totalorder %s27, 1
      %p101 = scmp.ne.s32.totalorder %s96, %s98
      %p102 = scmp.eq.s32.totalorder %s27, 0
      %p103 = por %p101, %p102
      %p104 = scmp.ne.s32.totalorder %s96, %s98
      %p105 = scmp.eq.s32.totalorder %s32, 1
      %p106 = por %p104, %p105
      %p107 = scmp.ne.s32.totalorder %s98, %s99
      %p108 = scmp.eq.s32.totalorder %s32, 0
      %p109 = por %p107, %p108
      %p110 = scmp.ne.s32.totalorder %s98, %s99
      %p111 = scmp.eq.s32.totalorder %s33, 1
      %p112 = por %p110, %p111
      %p114 = scmp.ne.s32.totalorder %s99, %s113
      %p115 = scmp.eq.s32.totalorder %s33, 0
      %p116 = por %p114, %p115
      %s118 = sadd.s32 %s117, 1
      %p121 = scmp.eq.s32.totalorder %s27, 1
      %p122 = scmp.ne.s32.totalorder %s117, %s119
      %p123 = scmp.eq.s32.totalorder %s27, 0
      %p124 = por %p122, %p123
      %p125 = scmp.ne.s32.totalorder %s117, %s119
      %p126 = scmp.eq.s32.totalorder %s32, 1
      %p127 = por %p125, %p126
      %p128 = scmp.ne.s32.totalorder %s119, %s120
      %p129 = scmp.eq.s32.totalorder %s32, 0
      %p130 = por %p128, %p129
      %p131 = scmp.ne.s32.totalorder %s119, %s120
      %p132 = scmp.eq.s32.totalorder %s33, 1
      %p133 = por %p131, %p132
      %p135 = scmp.ne.s32.totalorder %s120, %s134
      %p136 = scmp.eq.s32.totalorder %s33, 0
      %p137 = por %p135, %p136
      %s139 = sadd.s32 %s138, 1
      %p142 = scmp.eq.s32.totalorder %s27, 1
      %p143 = scmp.ne.s32.totalorder %s138, %s140
      %p144 = scmp.eq.s32.totalorder %s27, 0
      %p145 = por %p143, %p144
      %p146 = scmp.ne.s32.totalorder %s138, %s140
      %p147 = scmp.eq.s32.totalorder %s32, 1
      %p148 = por %p146, %p147
      %p149 = scmp.ne.s32.totalorder %s140, %s141
      %p150 = scmp.eq.s32.totalorder %s32, 0
      %p151 = por %p149, %p150
      %p152 = scmp.ne.s32.totalorder %s140, %s141
      %p153 = scmp.eq.s32.totalorder %s33, 1
      %p154 = por %p152, %p153
      %p156 = scmp.ne.s32.totalorder %s141, %s155
      %p157 = scmp.eq.s32.totalorder %s33, 0
      %p158 = por %p156, %p157
      %s160 = sadd.s32 %s159, 1
      %p163 = scmp.eq.s32.totalorder %s27, 1
      %p164 = scmp.ne.s32.totalorder %s159, %s161
      %p165 = scmp.eq.s32.totalorder %s27, 0
      %p166 = por %p164, %p165
      %p167 = scmp.ne.s32.totalorder %s159, %s161
      %p168 = scmp.eq.s32.totalorder %s32, 1
      %p169 = por %p167, %p168
      %p170 = scmp.ne.s32.totalorder %s161, %s162
      %p171 = scmp.eq.s32.totalorder %s32, 0
      %p172 = por %p170, %p171
      %p173 = scmp.ne.s32.totalorder %s161, %s162
      %p174 = scmp.eq.s32.totalorder %s33, 1
      %p175 = por %p173, %p174
      %p177 = scmp.ne.s32.totalorder %s162, %s176
      %p178 = scmp.eq.s32.totalorder %s33, 0
      %p179 = por %p177, %p178
      %s181 = sadd.s32 %s180, 1
      %p184 = scmp.eq.s32.totalorder %s27, 1
      %p185 = scmp.ne.s32.totalorder %s180, %s182
      %p186 = scmp.eq.s32.totalorder %s27, 0
      %p187 = por %p185, %p186
      %p188 = scmp.ne.s32.totalorder %s180, %s182
      %p189 = scmp.eq.s32.totalorder %s32, 1
      %p190 = por %p188, %p189
      %p191 = scmp.ne.s32.totalorder %s182, %s183
      %p192 = scmp.eq.s32.totalorder %s32, 0
      %p193 = por %p191, %p192
      %p194 = scmp.ne.s32.totalorder %s182, %s183
      %p195 = scmp.eq.s32.totalorder %s33, 1
      %p196 = por %p194, %p195
      %p198 = scmp.ne.s32.totalorder %s183, %s197
      %p199 = scmp.eq.s32.totalorder %s33, 0
      %p200 = por %p198, %p199
      %s201 = ssub.s32 %s34, %s46
      %s202 = ssub.s32 %s35, %s42
      %s203 = sor.u32 %s201, %s202
      %p204 = scmp.eq.s32.totalorder %s203, 0
      %s206 = sadd.s32 %s205, 1
      %s207 = scalar_select %p204, %s205, %s206
      %p210 = pneg %p204
      %p211 = scmp.eq.s32.totalorder %s27, 1
      %p212 = por %p210, %p211
      %p213 = scmp.ne.s32.totalorder %s205, %s208
      %p214 = scmp.eq.s32.totalorder %s27, 0
      %p215 = por %p213, %p214
      %p216 = scmp.ne.s32.totalorder %s205, %s208
      %p217 = scmp.eq.s32.totalorder %s32, 1
      %p218 = por %p216, %p217
      %p219 = scmp.ne.s32.totalorder %s208, %s209
      %p220 = scmp.eq.s32.totalorder %s32, 0
      %p221 = por %p219, %p220
      %p222 = scmp.ne.s32.totalorder %s208, %s209
      %p223 = scmp.eq.s32.totalorder %s33, 1
      %p224 = por %p222, %p223
      %p226 = scmp.ne.s32.totalorder %s209, %s225
      %p227 = scmp.eq.s32.totalorder %s33, 0
      %p228 = por %p226, %p227
      %s229 = ssub.s32 %s34, %s46
      %s230 = ssub.s32 %s35, %s42
      %s231 = sor.u32 %s229, %s230
      %p232 = scmp.eq.s32.totalorder %s231, 0
      %s234 = sadd.s32 %s233, 1
      %s235 = scalar_select %p232, %s233, %s234
      %p238 = pneg %p232
      %p239 = scmp.eq.s32.totalorder %s27, 1
      %p240 = por %p238, %p239
      %p241 = scmp.ne.s32.totalorder %s233, %s236
      %p242 = scmp.eq.s32.totalorder %s27, 0
      %p243 = por %p241, %p242
      %p244 = scmp.ne.s32.totalorder %s233, %s236
      %p245 = scmp.eq.s32.totalorder %s32, 1
      %p246 = por %p244, %p245
      %p247 = scmp.ne.s32.totalorder %s236, %s237
      %p248 = scmp.eq.s32.totalorder %s32, 0
      %p249 = por %p247, %p248
      %p250 = scmp.ne.s32.totalorder %s236, %s237
      %p251 = scmp.eq.s32.totalorder %s33, 1
      %p252 = por %p250, %p251
      %p254 = scmp.ne.s32.totalorder %s237, %s253
      %p255 = scmp.eq.s32.totalorder %s33, 0
      %p256 = por %p254, %p255
      %s257 = ssub.s32 %s34, %s46
      %s258 = ssub.s32 %s35, %s42
      %s259 = sor.u32 %s257, %s258
      %p260 = scmp.eq.s32.totalorder %s259, 0
      %s262 = sadd.s32 %s261, 1
      %s263 = scalar_select %p260, %s261, %s262
      %p266 = pneg %p260
      %p267 = scmp.eq.s32.totalorder %s27, 1
      %p268 = por %p266, %p267
      %p269 = scmp.ne.s32.totalorder %s261, %s264
      %p270 = scmp.eq.s32.totalorder %s27, 0
      %p271 = por %p269, %p270
      %p272 = scmp.ne.s32.totalorder %s261, %s264
      %p273 = scmp.eq.s32.totalorder %s32, 1
      %p274 = por %p272, %p273
      %p275 = scmp.ne.s32.totalorder %s264, %s265
      %p276 = scmp.eq.s32.totalorder %s32, 0
      %p277 = por %p275, %p276
      %p278 = scmp.ne.s32.totalorder %s264, %s265
      %p279 = scmp.eq.s32.totalorder %s33, 1
      %p280 = por %p278, %p279
      %p282 = scmp.ne.s32.totalorder %s265, %s281
      %p283 = scmp.eq.s32.totalorder %s33, 0
      %p284 = por %p282, %p283
      %p285 = scmp.le.s32.totalorder 1, %s27
      %p286 = scmp.lt.s32.totalorder %s27, 3
      %p287 = pnand %p285, %p286
      %p288 = pneg %p287
      // Predicated region
      $region9: #{tpu_custom_call.1} parent=5 // pred_check
        _
      $region10: #{tpu_custom_call.1} parent=5 // pred_check_branch
        %290 = sbr.rel (%p287) target = $region12
      $region11: #{tpu_custom_call.1} parent=5 // pred_region
        %s291 = ssub.s32 %s27, 1
        // Predicated region
        $region13: #{tpu_custom_call.1} parent=11 // pred_check
          %p292 = pneg %p88
        $region14: #{tpu_custom_call.1} parent=11 // pred_check_branch
          %294 = sbr.rel (%p292) target = $region16
        $region15: #{tpu_custom_call.1} parent=11 // pred_region
          %s296 = ssub.s32 1024, 1024
          %297 = vsyncadd [#allocation6], %s296
          %s298 = sshll.u32 [#allocation5], 4
          %s299 = int_to_ptr.vmem [resolvable:$true] %s298
          %304 = dma.hbm_to_vmem [thread:$0]  %s1, 1024, %s299, [#allocation6], 64, 64, 4
        $region16: #{tpu_custom_call.1} parent=11 // pred_fallthru
          _
        // Predicated region
        $region17: #{tpu_custom_call.1} parent=11 // pred_check
          %p305 = pneg %p109
        $region18: #{tpu_custom_call.1} parent=11 // pred_check_branch
          %307 = sbr.rel (%p305) target = $region20
        $region19: #{tpu_custom_call.1} parent=11 // pred_region
          _
        $region20: #{tpu_custom_call.1} parent=11 // pred_fallthru
          _
        // Predicated region
        $region21: #{tpu_custom_call.1} parent=11 // pred_check
          %p308 = pneg %p130
        $region22: #{tpu_custom_call.1} parent=11 // pred_check_branch
          %310 = sbr.rel (%p308) target = $region24
        $region23: #{tpu_custom_call.1} parent=11 // pred_region
          %s312 = ssub.s32 1024, 1024
          %313 = vsyncadd [#allocation6], %s312
          %s314 = sshll.u32 [#allocation7], 4
          %s315 = int_to_ptr.vmem [resolvable:$true] %s314
          %320 = dma.hbm_to_vmem [thread:$0]  %s3, 1024, %s315, [#allocation6], 64, 64, 4
        $region24: #{tpu_custom_call.1} parent=11 // pred_fallthru
          _
        // Predicated region
        $region25: #{tpu_custom_call.1} parent=11 // pred_check
          %p321 = pneg %p151
        $region26: #{tpu_custom_call.1} parent=11 // pred_check_branch
          %323 = sbr.rel (%p321) target = $region28
        $region27: #{tpu_custom_call.1} parent=11 // pred_region
          _
        $region28: #{tpu_custom_call.1} parent=11 // pred_fallthru
          _
        // Predicated region
        $region29: #{tpu_custom_call.1} parent=11 // pred_check
          %p324 = pneg %p172
        $region30: #{tpu_custom_call.1} parent=11 // pred_check_branch
          %326 = sbr.rel (%p324) target = $region32
        $region31: #{tpu_custom_call.1} parent=11 // pred_region
          %s328 = ssub.s32 1024, 1024
          %329 = vsyncadd [#allocation9], %s328
          %s330 = sshll.u32 [#allocation8], 4
          %s331 = int_to_ptr.vmem [resolvable:$true] %s330
          %336 = dma.hbm_to_vmem [thread:$0]  %s5, 1024, %s331, [#allocation9], 64, 64, 4
        $region32: #{tpu_custom_call.1} parent=11 // pred_fallthru
          _
        // Predicated region
        $region33: #{tpu_custom_call.1} parent=11 // pred_check
          %p337 = pneg %p193
        $region34: #{tpu_custom_call.1} parent=11 // pred_check_branch
          %339 = sbr.rel (%p337) target = $region36
        $region35: #{tpu_custom_call.1} parent=11 // pred_region
          _
        $region36: #{tpu_custom_call.1} parent=11 // pred_fallthru
          _
      $region12: #{tpu_custom_call.1} parent=5 // pred_fallthru
        _
      %p340 = scmp.lt.s32.totalorder %s27, 2
      // Predicated region
      $region37: #{tpu_custom_call.1} parent=5 // pred_check
        %p341 = pneg %p340
      $region38: #{tpu_custom_call.1} parent=5 // pred_check_branch
        %343 = sbr.rel (%p341) target = $region40
      $region39: #{tpu_custom_call.1} parent=5 // pred_region
        // Predicated region
        $region41: #{tpu_custom_call.1} parent=39 // pred_check
          %p344 = pneg %p61
        $region42: #{tpu_custom_call.1} parent=39 // pred_check_branch
          %346 = sbr.rel (%p344) target = $region44
        $region43: #{tpu_custom_call.1} parent=39 // pred_region
          %s347 = sand.u32 %s51, 1
          %s348 = scalar_lea.sflag [#allocation3], %s347
          %s349 = sand.u32 %s51, 1
          %s350 = smul.addr %s349, 128
          %s351 = scalar_lea.vmem [#allocation2], %s350
          %s352 = smul.u32 16, %s35
          %s354 = ssub.s32 2048, 2048
          %355 = vsyncadd %s348, %s354
          %s356 = smul.addr %s34, 16
          %s357 = sadd.s32 %s352, %s356
          %s358 = smul.addr %s357, 128
          %s359 = scalar_lea.hbm %s0, %s358
          %s360 = sshll.u32 %s351, 4
          %s361 = int_to_ptr.vmem [resolvable:$true] %s360
          %366 = dma.hbm_to_vmem [thread:$0]  %s359, 2048, %s361, %s348, 128, 128, 8
        $region44: #{tpu_custom_call.1} parent=39 // pred_fallthru
          _
      $region40: #{tpu_custom_call.1} parent=5 // pred_fallthru
        _
      %p367 = scmp.le.s32.totalorder 1, %s27
      %p368 = scmp.lt.s32.totalorder %s27, 3
      %p369 = pnand %p367, %p368
      %p370 = pneg %p369
      // Predicated region
      $region45: #{tpu_custom_call.1} parent=5 // pred_check
        _
      $region46: #{tpu_custom_call.1} parent=5 // pred_check_branch
        %372 = sbr.rel (%p369) target = $region48
      $region47: #{tpu_custom_call.1} parent=5 // pred_region
        %s373 = ssub.s32 %s27, 1
        %s374 = sand.u32 %s54, 1
        %s375 = scalar_lea.sflag [#allocation3], %s374
        %s376 = sand.u32 %s54, 1
        %s377 = smul.addr %s376, 128
        %s378 = scalar_lea.vmem [#allocation2], %s377
        // Predicated region
        $region49: #{tpu_custom_call.1} parent=47 // pred_check
          %p379 = pneg %p67
        $region50: #{tpu_custom_call.1} parent=47 // pred_check_branch
          %381 = sbr.rel (%p379) target = $region52
        $region51: #{tpu_custom_call.1} parent=47 // pred_region
          %382 = dma.done %s375, 2048
        $region52: #{tpu_custom_call.1} parent=47 // pred_fallthru
          _
        // Predicated region
        $region53: #{tpu_custom_call.1} parent=47 // pred_check
          %p383 = pneg %p88
        $region54: #{tpu_custom_call.1} parent=47 // pred_check_branch
          %385 = sbr.rel (%p383) target = $region56
        $region55: #{tpu_custom_call.1} parent=47 // pred_region
          %386 = dma.done [#allocation6], 1024
        $region56: #{tpu_custom_call.1} parent=47 // pred_fallthru
          _
        // Predicated region
        $region57: #{tpu_custom_call.1} parent=47 // pred_check
          %p387 = pneg %p130
        $region58: #{tpu_custom_call.1} parent=47 // pred_check_branch
          %389 = sbr.rel (%p387) target = $region60
        $region59: #{tpu_custom_call.1} parent=47 // pred_region
          %390 = dma.done [#allocation6], 1024
        $region60: #{tpu_custom_call.1} parent=47 // pred_fallthru
          _
        // Predicated region
        $region61: #{tpu_custom_call.1} parent=47 // pred_check
          %p391 = pneg %p172
        $region62: #{tpu_custom_call.1} parent=47 // pred_check_branch
          %393 = sbr.rel (%p391) target = $region64
        $region63: #{tpu_custom_call.1} parent=47 // pred_region
          %394 = dma.done [#allocation9], 1024
        $region64: #{tpu_custom_call.1} parent=47 // pred_fallthru
          _
        %s395 = sand.u32 %s54, 1
        %s396 = scalar_lea.sflag [#allocation3], %s395
        %s397 = sand.u32 %s54, 1
        %s398 = smul.addr %s397, 128
        %s399 = scalar_lea.vmem [#allocation2], %s398
        %p400 = pneg %p67
        %p401 = pneg %p64
        %p402 = pneg %p88
        %p403 = pneg %p85
        %p404 = pneg %p109
        %p405 = pneg %p106
        %p406 = pneg %p130
        %p407 = pneg %p127
        %p408 = pneg %p151
        %p409 = pneg %p148
        %p410 = pneg %p172
        %p411 = pneg %p169
        %p412 = pneg %p193
        %p413 = pneg %p190
        %p414 = pneg %p221
        %p415 = pneg %p218
        %s416 = sand.u32 %s208, 1
        %s417 = scalar_lea.sflag [#allocation4], %s416
        %s418 = sand.u32 %s208, 1
        %s419 = smul.addr %s418, 64
        %s420 = scalar_lea.vmem [#allocation10], %s419
        %p421 = pneg %p249
        %p422 = pneg %p246
        %s423 = sand.u32 %s32, 1
        %s424 = scalar_lea.sflag [#allocation12], %s423
        %s425 = sand.u32 %s236, 1
        %s426 = smul.addr %s425, 64
        %s427 = scalar_lea.vmem [#allocation11], %s426
        %p428 = pneg %p277
        %p429 = pneg %p274
        %s430 = sand.u32 %s32, 1
        %s431 = scalar_lea.sflag [#allocation12], %s430
        %s432 = sand.u32 %s264, 1
        %s433 = smul.addr %s432, 64
        %s434 = scalar_lea.vmem [#allocation13], %s433
        %s435 = smul.u32 16, %s37
        %s436 = smul.u32 16, %s37
        %s437 = smul.u32 16, %s37
        %s438 = smul.u32 16, %s37
        %v440 = vld [vmem:[%s378] sm:$0xff]
        %v441 = vld [vmem:[%s378 + $0x8] sm:$0xff]
        %v442 = vld [vmem:[%s378 + $0x10] sm:$0xff]
        %v443 = vld [vmem:[%s378 + $0x18] sm:$0xff]
        %v444 = vld [vmem:[%s378 + $0x20] sm:$0xff]
        %v445 = vld [vmem:[%s378 + $0x28] sm:$0xff]
        %v446 = vld [vmem:[%s378 + $0x30] sm:$0xff]
        %v447 = vld [vmem:[%s378 + $0x38] sm:$0xff]
        %v448 = vld [vmem:[%s378 + $0x40] sm:$0xff]
        %v449 = vld [vmem:[%s378 + $0x48] sm:$0xff]
        %v450 = vld [vmem:[%s378 + $0x50] sm:$0xff]
        %v451 = vld [vmem:[%s378 + $0x58] sm:$0xff]
        %v452 = vld [vmem:[%s378 + $0x60] sm:$0xff]
        %v453 = vld [vmem:[%s378 + $0x68] sm:$0xff]
        %v454 = vld [vmem:[%s378 + $0x70] sm:$0xff]
        %v455 = vld [vmem:[%s378 + $0x78] sm:$0xff]
        %v456 = vpack.c.bf16 %v441, %v440
        %v457 = vpack.c.bf16 %v443, %v442
        %v458 = vpack.c.bf16 %v445, %v444
        %v459 = vpack.c.bf16 %v447, %v446
        %v460 = vpack.c.bf16 %v449, %v448
        %v461 = vpack.c.bf16 %v451, %v450
        %v462 = vpack.c.bf16 %v453, %v452
        %v463 = vpack.c.bf16 %v455, %v454
        %v464 = vld [vmem:[#allocation5] sm:$0xf]
        %v465 = vld [vmem:[#allocation5 + $0x4] sm:$0xf]
        %v466 = vld [vmem:[#allocation5 + $0x8] sm:$0xf]
        %v467 = vld [vmem:[#allocation5 + $0xc] sm:$0xf]
        %v468 = vld [vmem:[#allocation5 + $0x10] sm:$0xf]
        %v469 = vld [vmem:[#allocation5 + $0x14] sm:$0xf]
        %v470 = vld [vmem:[#allocation5 + $0x18] sm:$0xf]
        %v471 = vld [vmem:[#allocation5 + $0x1c] sm:$0xf]
        %v472 = vld [vmem:[#allocation5 + $0x20] sm:$0xf]
        %v473 = vld [vmem:[#allocation5 + $0x24] sm:$0xf]
        %v474 = vld [vmem:[#allocation5 + $0x28] sm:$0xf]
        %v475 = vld [vmem:[#allocation5 + $0x2c] sm:$0xf]
        %v476 = vld [vmem:[#allocation5 + $0x30] sm:$0xf]
        %v477 = vld [vmem:[#allocation5 + $0x34] sm:$0xf]
        %v478 = vld [vmem:[#allocation5 + $0x38] sm:$0xf]
        %v479 = vld [vmem:[#allocation5 + $0x3c] sm:$0xf]
        %v480 = vld [vmem:[%s2] sm:$0x1]
        %v482 = vlaneseq
        %v483 = vshrl.u32 %v482, 7
        %v484 = vsub.s32 0, %v483
        %v485 = vrot.slane %v480, %v484
        %v503 = vunpack.c.l.b16 %v464
        %v504 = vunpack.c.l.b16 %v465
        %v505 = vunpack.c.l.b16 %v466
        %v506 = vunpack.c.l.b16 %v467
        %v507 = vunpack.c.l.b16 %v468
        %v508 = vunpack.c.l.b16 %v469
        %v509 = vunpack.c.l.b16 %v470
        %v510 = vunpack.c.l.b16 %v471
        %v511 = vunpack.c.l.b16 %v472
        %v512 = vunpack.c.l.b16 %v473
        %v513 = vunpack.c.l.b16 %v474
        %v514 = vunpack.c.l.b16 %v475
        %v515 = vunpack.c.l.b16 %v476
        %v516 = vunpack.c.l.b16 %v477
        %v517 = vunpack.c.l.b16 %v478
        %v518 = vunpack.c.l.b16 %v479
        %v519 = vpack.c.b16 %v504, %v503
        %v520 = vpack.c.b16 %v506, %v505
        %v521 = vpack.c.b16 %v508, %v507
        %v522 = vpack.c.b16 %v510, %v509
        %v523 = vpack.c.b16 %v512, %v511
        %v524 = vpack.c.b16 %v514, %v513
        %v525 = vpack.c.b16 %v516, %v515
        %v526 = vpack.c.b16 %v518, %v517
        %535 = vmatprep.subr.bf16.mxu0 0
        %536 = vmatpush1.bf16.msra.mxu0 %v519
        %537 = vmatprep.subr.bf16.mxu0 0
        %538 = vmatpush1.bf16.msra.mxu0 %v520
        %539 = vmatprep.subr.bf16.mxu0 0
        %540 = vmatpush1.bf16.msra.mxu0 %v521
        %541 = vmatprep.subr.bf16.mxu0 0
        %542 = vmatpush1.bf16.msra.mxu0 %v522
        %543 = vmatprep.subr.bf16.mxu0 0
        %544 = vmatpush1.bf16.msra.mxu0 %v523
        %545 = vmatprep.subr.bf16.mxu0 0
        %546 = vmatpush1.bf16.msra.mxu0 %v524
        %547 = vmatprep.subr.bf16.mxu0 0
        %548 = vmatpush1.bf16.msra.mxu0 %v525
        %549 = vmatprep.subr.bf16.mxu0 0
        %550 = vmatpush1.bf16.msra.mxu0 %v526
        %551 = vmatprep.subr.bf16.mxu0 0
        %552 = vmatpush1.bf16.msra.mxu0 0
        %553 = vmatprep.subr.bf16.mxu0 0
        %554 = vmatpush1.bf16.msra.mxu0 0
        %555 = vmatprep.subr.bf16.mxu0 0
        %556 = vmatpush1.bf16.msra.mxu0 0
        %557 = vmatprep.subr.bf16.mxu0 0
        %558 = vmatpush1.bf16.msra.mxu0 0
        %559 = vmatprep.subr.bf16.mxu0 0
        %560 = vmatpush1.bf16.msra.mxu0 0
        %561 = vmatprep.subr.bf16.mxu0 0
        %562 = vmatpush1.bf16.msra.mxu0 0
        %563 = vmatprep.subr.bf16.mxu0 0
        %564 = vmatpush1.bf16.msra.mxu0 0
        %565 = vmatprep.subr.bf16.mxu0 0
        %566 = vmatpush1.bf16.msra.mxu0 0
        %567 = vmatprep.mubr.bf16.mxu0 0
        %568 = vmatmul.mubr.bf16.gmra.mrb[0].mxu0 %v456
        %v569 = vpop.f32.mrb[0].mxu0
        %v570 = vadd.f32 %v485, %v569
        %v571 = vpop.f32.mrb[0].mxu0
        %v572 = vpop.f32.mrb[0].mxu0
        %v573 = vadd.f32 %v485, %v572
        %v574 = vpop.f32.mrb[0].mxu0
        %575 = vmatprep.mubr.bf16.mxu0 0
        %576 = vmatmul.mubr.bf16.gmra.mrb[0].mxu0 %v457
        %v577 = vpop.f32.mrb[0].mxu0
        %v578 = vadd.f32 %v485, %v577
        %v579 = vpop.f32.mrb[0].mxu0
        %v580 = vpop.f32.mrb[0].mxu0
        %v581 = vadd.f32 %v485, %v580
        %v582 = vpop.f32.mrb[0].mxu0
        %583 = vmatprep.mubr.bf16.mxu0 0
        %584 = vmatmul.mubr.bf16.gmra.mrb[0].mxu0 %v458
        %v585 = vpop.f32.mrb[0].mxu0
        %v586 = vadd.f32 %v485, %v585
        %v587 = vpop.f32.mrb[0].mxu0
        %v588 = vpop.f32.mrb[0].mxu0
        %v589 = vadd.f32 %v485, %v588
        %v590 = vpop.f32.mrb[0].mxu0
        %591 = vmatprep.mubr.bf16.mxu0 0
        %592 = vmatmul.mubr.bf16.gmra.mrb[0].mxu0 %v459
        %v593 = vpop.f32.mrb[0].mxu0
        %v594 = vadd.f32 %v485, %v593
        %v595 = vpop.f32.mrb[0].mxu0
        %v596 = vpop.f32.mrb[0].mxu0
        %v597 = vadd.f32 %v485, %v596
        %v598 = vpop.f32.mrb[0].mxu0
        %599 = vmatprep.mubr.bf16.mxu0 0
        %600 = vmatmul.mubr.bf16.gmra.mrb[0].mxu0 %v460
        %v601 = vpop.f32.mrb[0].mxu0
        %v602 = vadd.f32 %v485, %v601
        %v603 = vpop.f32.mrb[0].mxu0
        %v604 = vpop.f32.mrb[0].mxu0
        %v605 = vadd.f32 %v485, %v604
        %v606 = vpop.f32.mrb[0].mxu0
        %607 = vmatprep.mubr.bf16.mxu0 0
        %608 = vmatmul.mubr.bf16.gmra.mrb[0].mxu0 %v461
        %v609 = vpop.f32.mrb[0].mxu0
        %v610 = vadd.f32 %v485, %v609
        %v611 = vpop.f32.mrb[0].mxu0
        %v612 = vpop.f32.mrb[0].mxu0
        %v613 = vadd.f32 %v485, %v612
        %v614 = vpop.f32.mrb[0].mxu0
        %615 = vmatprep.mubr.bf16.mxu0 0
        %616 = vmatmul.mubr.bf16.gmra.mrb[0].mxu0 %v462
        %v617 = vpop.f32.mrb[0].mxu0
        %v618 = vadd.f32 %v485, %v617
        %v619 = vpop.f32.mrb[0].mxu0
        %v620 = vpop.f32.mrb[0].mxu0
        %v621 = vadd.f32 %v485, %v620
        %v622 = vpop.f32.mrb[0].mxu0
        %623 = vmatprep.mubr.bf16.mxu0 0
        %624 = vmatmul.mubr.bf16.gmra.mrb[0].mxu0 %v463
        %v625 = vpop.f32.mrb[0].mxu0
        %v626 = vadd.f32 %v485, %v625
        %v627 = vpop.f32.mrb[0].mxu0
        %v628 = vpop.f32.mrb[0].mxu0
        %v629 = vadd.f32 %v485, %v628
        %v630 = vpop.f32.mrb[0].mxu0
        %631 = vdwg.mxu0
        %v632 = vld [vmem:[#allocation7] sm:$0xf]
        %v633 = vld [vmem:[#allocation7 + $0x4] sm:$0xf]
        %v634 = vld [vmem:[#allocation7 + $0x8] sm:$0xf]
        %v635 = vld [vmem:[#allocation7 + $0xc] sm:$0xf]
        %v636 = vld [vmem:[#allocation7 + $0x10] sm:$0xf]
        %v637 = vld [vmem:[#allocation7 + $0x14] sm:$0xf]
        %v638 = vld [vmem:[#allocation7 + $0x18] sm:$0xf]
        %v639 = vld [vmem:[#allocation7 + $0x1c] sm:$0xf]
        %v640 = vld [vmem:[#allocation7 + $0x20] sm:$0xf]
        %v641 = vld [vmem:[#allocation7 + $0x24] sm:$0xf]
        %v642 = vld [vmem:[#allocation7 + $0x28] sm:$0xf]
        %v643 = vld [vmem:[#allocation7 + $0x2c] sm:$0xf]
        %v644 = vld [vmem:[#allocation7 + $0x30] sm:$0xf]
        %v645 = vld [vmem:[#allocation7 + $0x34] sm:$0xf]
        %v646 = vld [vmem:[#allocation7 + $0x38] sm:$0xf]
        %v647 = vld [vmem:[#allocation7 + $0x3c] sm:$0xf]
        %v648 = vld [vmem:[%s4] sm:$0x1]
        %v650 = vlaneseq
        %v651 = vshrl.u32 %v650, 7
        %v652 = vsub.s32 0, %v651
        %v653 = vrot.slane %v648, %v652
        %v671 = vunpack.c.l.b16 %v632
        %v672 = vunpack.c.l.b16 %v633
        %v673 = vunpack.c.l.b16 %v634
        %v674 = vunpack.c.l.b16 %v635
        %v675 = vunpack.c.l.b16 %v636
        %v676 = vunpack.c.l.b16 %v637
        %v677 = vunpack.c.l.b16 %v638
        %v678 = vunpack.c.l.b16 %v639
        %v679 = vunpack.c.l.b16 %v640
        %v680 = vunpack.c.l.b16 %v641
        %v681 = vunpack.c.l.b16 %v642
        %v682 = vunpack.c.l.b16 %v643
        %v683 = vunpack.c.l.b16 %v644
        %v684 = vunpack.c.l.b16 %v645
        %v685 = vunpack.c.l.b16 %v646
        %v686 = vunpack.c.l.b16 %v647
        %v687 = vpack.c.b16 %v672, %v671
        %v688 = vpack.c.b16 %v674, %v673
        %v689 = vpack.c.b16 %v676, %v675
        %v690 = vpack.c.b16 %v678, %v677
        %v691 = vpack.c.b16 %v680, %v679
        %v692 = vpack.c.b16 %v682, %v681
        %v693 = vpack.c.b16 %v684, %v683
        %v694 = vpack.c.b16 %v686, %v685
        %703 = vmatprep.subr.bf16.mxu0 0
        %704 = vmatpush1.bf16.msra.mxu0 %v687
        %705 = vmatprep.subr.bf16.mxu0 0
        %706 = vmatpush1.bf16.msra.mxu0 %v688
        %707 = vmatprep.subr.bf16.mxu0 0
        %708 = vmatpush1.bf16.msra.mxu0 %v689
        %709 = vmatprep.subr.bf16.mxu0 0
        %710 = vmatpush1.bf16.msra.mxu0 %v690
        %711 = vmatprep.subr.bf16.mxu0 0
        %712 = vmatpush1.bf16.msra.mxu0 %v691
        %713 = vmatprep.subr.bf16.mxu0 0
        %714 = vmatpush1.bf16.msra.mxu0 %v692
        %715 = vmatprep.subr.bf16.mxu0 0
        %716 = vmatpush1.bf16.msra.mxu0 %v693
        %717 = vmatprep.subr.bf16.mxu0 0
        %718 = vmatpush1.bf16.msra.mxu0 %v694
        %719 = vmatprep.subr.bf16.mxu0 0
        %720 = vmatpush1.bf16.msra.mxu0 0
        %721 = vmatprep.subr.bf16.mxu0 0
        %722 = vmatpush1.bf16.msra.mxu0 0
        %723 = vmatprep.subr.bf16.mxu0 0
        %724 = vmatpush1.bf16.msra.mxu0 0
        %725 = vmatprep.subr.bf16.mxu0 0
        %726 = vmatpush1.bf16.msra.mxu0 0
        %727 = vmatprep.subr.bf16.mxu0 0
        %728 = vmatpush1.bf16.msra.mxu0 0
        %729 = vmatprep.subr.bf16.mxu0 0
        %730 = vmatpush1.bf16.msra.mxu0 0
        %731 = vmatprep.subr.bf16.mxu0 0
        %732 = vmatpush1.bf16.msra.mxu0 0
        %733 = vmatprep.subr.bf16.mxu0 0
        %734 = vmatpush1.bf16.msra.mxu0 0
        %735 = vmatprep.mubr.bf16.mxu0 0
        %736 = vmatmul.mubr.bf16.gmra.mrb[0].mxu0 %v456
        %v737 = vpop.f32.mrb[0].mxu0
        %v738 = vadd.f32 %v653, %v737
        %v739 = vpop.f32.mrb[0].mxu0
        %v740 = vpop.f32.mrb[0].mxu0
        %v741 = vadd.f32 %v653, %v740
        %v742 = vpop.f32.mrb[0].mxu0
        %743 = vmatprep.mubr.bf16.mxu0 0
        %744 = vmatmul.mubr.bf16.gmra.mrb[0].mxu0 %v457
        %v745 = vpop.f32.mrb[0].mxu0
        %v746 = vadd.f32 %v653, %v745
        %v747 = vpop.f32.mrb[0].mxu0
        %v748 = vpop.f32.mrb[0].mxu0
        %v749 = vadd.f32 %v653, %v748
        %v750 = vpop.f32.mrb[0].mxu0
        %751 = vmatprep.mubr.bf16.mxu0 0
        %752 = vmatmul.mubr.bf16.gmra.mrb[0].mxu0 %v458
        %v753 = vpop.f32.mrb[0].mxu0
        %v754 = vadd.f32 %v653, %v753
        %v755 = vpop.f32.mrb[0].mxu0
        %v756 = vpop.f32.mrb[0].mxu0
        %v757 = vadd.f32 %v653, %v756
        %v758 = vpop.f32.mrb[0].mxu0
        %759 = vmatprep.mubr.bf16.mxu0 0
        %760 = vmatmul.mubr.bf16.gmra.mrb[0].mxu0 %v459
        %v761 = vpop.f32.mrb[0].mxu0
        %v762 = vadd.f32 %v653, %v761
        %v763 = vpop.f32.mrb[0].mxu0
        %v764 = vpop.f32.mrb[0].mxu0
        %v765 = vadd.f32 %v653, %v764
        %v766 = vpop.f32.mrb[0].mxu0
        %767 = vmatprep.mubr.bf16.mxu0 0
        %768 = vmatmul.mubr.bf16.gmra.mrb[0].mxu0 %v460
        %v769 = vpop.f32.mrb[0].mxu0
        %v770 = vadd.f32 %v653, %v769
        %v771 = vpop.f32.mrb[0].mxu0
        %v772 = vpop.f32.mrb[0].mxu0
        %v773 = vadd.f32 %v653, %v772
        %v774 = vpop.f32.mrb[0].mxu0
        %775 = vmatprep.mubr.bf16.mxu0 0
        %776 = vmatmul.mubr.bf16.gmra.mrb[0].mxu0 %v461
        %v777 = vpop.f32.mrb[0].mxu0
        %v778 = vadd.f32 %v653, %v777
        %v779 = vpop.f32.mrb[0].mxu0
        %v780 = vpop.f32.mrb[0].mxu0
        %v781 = vadd.f32 %v653, %v780
        %v782 = vpop.f32.mrb[0].mxu0
        %783 = vmatprep.mubr.bf16.mxu0 0
        %784 = vmatmul.mubr.bf16.gmra.mrb[0].mxu0 %v462
        %v785 = vpop.f32.mrb[0].mxu0
        %v786 = vadd.f32 %v653, %v785
        %v787 = vpop.f32.mrb[0].mxu0
        %v788 = vpop.f32.mrb[0].mxu0
        %v789 = vadd.f32 %v653, %v788
        %v790 = vpop.f32.mrb[0].mxu0
        %791 = vmatprep.mubr.bf16.mxu0 0
        %792 = vmatmul.mubr.bf16.gmra.mrb[0].mxu0 %v463
        %v793 = vpop.f32.mrb[0].mxu0
        %v794 = vadd.f32 %v653, %v793
        %v795 = vpop.f32.mrb[0].mxu0
        %v796 = vpop.f32.mrb[0].mxu0
        %v797 = vadd.f32 %v653, %v796
        %v798 = vpop.f32.mrb[0].mxu0
        %799 = vdwg.mxu0
        %v800 = vld [vmem:[#allocation8] sm:$0xf]
        %v801 = vld [vmem:[#allocation8 + $0x4] sm:$0xf]
        %v802 = vld [vmem:[#allocation8 + $0x8] sm:$0xf]
        %v803 = vld [vmem:[#allocation8 + $0xc] sm:$0xf]
        %v804 = vld [vmem:[#allocation8 + $0x10] sm:$0xf]
        %v805 = vld [vmem:[#allocation8 + $0x14] sm:$0xf]
        %v806 = vld [vmem:[#allocation8 + $0x18] sm:$0xf]
        %v807 = vld [vmem:[#allocation8 + $0x1c] sm:$0xf]
        %v808 = vld [vmem:[#allocation8 + $0x20] sm:$0xf]
        %v809 = vld [vmem:[#allocation8 + $0x24] sm:$0xf]
        %v810 = vld [vmem:[#allocation8 + $0x28] sm:$0xf]
        %v811 = vld [vmem:[#allocation8 + $0x2c] sm:$0xf]
        %v812 = vld [vmem:[#allocation8 + $0x30] sm:$0xf]
        %v813 = vld [vmem:[#allocation8 + $0x34] sm:$0xf]
        %v814 = vld [vmem:[#allocation8 + $0x38] sm:$0xf]
        %v815 = vld [vmem:[#allocation8 + $0x3c] sm:$0xf]
        %v816 = vld [vmem:[%s6] sm:$0x1]
        %v818 = vlaneseq
        %v819 = vshrl.u32 %v818, 7
        %v820 = vsub.s32 0, %v819
        %v821 = vrot.slane %v816, %v820
        %v839 = vunpack.c.l.b16 %v800
        %v840 = vunpack.c.l.b16 %v801
        %v841 = vunpack.c.l.b16 %v802
        %v842 = vunpack.c.l.b16 %v803
        %v843 = vunpack.c.l.b16 %v804
        %v844 = vunpack.c.l.b16 %v805
        %v845 = vunpack.c.l.b16 %v806
        %v846 = vunpack.c.l.b16 %v807
        %v847 = vunpack.c.l.b16 %v808
        %v848 = vunpack.c.l.b16 %v809
        %v849 = vunpack.c.l.b16 %v810
        %v850 = vunpack.c.l.b16 %v811
        %v851 = vunpack.c.l.b16 %v812
        %v852 = vunpack.c.l.b16 %v813
        %v853 = vunpack.c.l.b16 %v814
        %v854 = vunpack.c.l.b16 %v815
        %v855 = vpack.c.b16 %v840, %v839
        %v856 = vpack.c.b16 %v842, %v841
        %v857 = vpack.c.b16 %v844, %v843
        %v858 = vpack.c.b16 %v846, %v845
        %v859 = vpack.c.b16 %v848, %v847
        %v860 = vpack.c.b16 %v850, %v849
        %v861 = vpack.c.b16 %v852, %v851
        %v862 = vpack.c.b16 %v854, %v853
        %871 = vmatprep.subr.bf16.mxu0 0
        %872 = vmatpush1.bf16.msra.mxu0 %v855
        %873 = vmatprep.subr.bf16.mxu0 0
        %874 = vmatpush1.bf16.msra.mxu0 %v856
        %875 = vmatprep.subr.bf16.mxu0 0
        %876 = vmatpush1.bf16.msra.mxu0 %v857
        %877 = vmatprep.subr.bf16.mxu0 0
        %878 = vmatpush1.bf16.msra.mxu0 %v858
        %879 = vmatprep.subr.bf16.mxu0 0
        %880 = vmatpush1.bf16.msra.mxu0 %v859
        %881 = vmatprep.subr.bf16.mxu0 0
        %882 = vmatpush1.bf16.msra.mxu0 %v860
        %883 = vmatprep.subr.bf16.mxu0 0
        %884 = vmatpush1.bf16.msra.mxu0 %v861
        %885 = vmatprep.subr.bf16.mxu0 0
        %886 = vmatpush1.bf16.msra.mxu0 %v862
        %887 = vmatprep.subr.bf16.mxu0 0
        %888 = vmatpush1.bf16.msra.mxu0 0
        %889 = vmatprep.subr.bf16.mxu0 0
        %890 = vmatpush1.bf16.msra.mxu0 0
        %891 = vmatprep.subr.bf16.mxu0 0
        %892 = vmatpush1.bf16.msra.mxu0 0
        %893 = vmatprep.subr.bf16.mxu0 0
        %894 = vmatpush1.bf16.msra.mxu0 0
        %895 = vmatprep.subr.bf16.mxu0 0
        %896 = vmatpush1.bf16.msra.mxu0 0
        %897 = vmatprep.subr.bf16.mxu0 0
        %898 = vmatpush1.bf16.msra.mxu0 0
        %899 = vmatprep.subr.bf16.mxu0 0
        %900 = vmatpush1.bf16.msra.mxu0 0
        %901 = vmatprep.subr.bf16.mxu0 0
        %902 = vmatpush1.bf16.msra.mxu0 0
        %903 = vmatprep.mubr.bf16.mxu0 0
        %904 = vmatmul.mubr.bf16.gmra.mrb[0].mxu0 %v456
        %v905 = vpop.f32.mrb[0].mxu0
        %v906 = vadd.f32 %v821, %v905
        %v907 = vpop.f32.mrb[0].mxu0
        %v908 = vpop.f32.mrb[0].mxu0
        %v909 = vadd.f32 %v821, %v908
        %v910 = vpop.f32.mrb[0].mxu0
        %911 = vmatprep.mubr.bf16.mxu0 0
        %912 = vmatmul.mubr.bf16.gmra.mrb[0].mxu0 %v457
        %v913 = vpop.f32.mrb[0].mxu0
        %v914 = vadd.f32 %v821, %v913
        %v915 = vpop.f32.mrb[0].mxu0
        %v916 = vpop.f32.mrb[0].mxu0
        %v917 = vadd.f32 %v821, %v916
        %v918 = vpop.f32.mrb[0].mxu0
        %919 = vmatprep.mubr.bf16.mxu0 0
        %920 = vmatmul.mubr.bf16.gmra.mrb[0].mxu0 %v458
        %v921 = vpop.f32.mrb[0].mxu0
        %v922 = vadd.f32 %v821, %v921
        %v923 = vpop.f32.mrb[0].mxu0
        %v924 = vpop.f32.mrb[0].mxu0
        %v925 = vadd.f32 %v821, %v924
        %v926 = vpop.f32.mrb[0].mxu0
        %927 = vmatprep.mubr.bf16.mxu0 0
        %928 = vmatmul.mubr.bf16.gmra.mrb[0].mxu0 %v459
        %v929 = vpop.f32.mrb[0].mxu0
        %v930 = vadd.f32 %v821, %v929
        %v931 = vpop.f32.mrb[0].mxu0
        %v932 = vpop.f32.mrb[0].mxu0
        %v933 = vadd.f32 %v821, %v932
        %v934 = vpop.f32.mrb[0].mxu0
        %935 = vmatprep.mubr.bf16.mxu0 0
        %936 = vmatmul.mubr.bf16.gmra.mrb[0].mxu0 %v460
        %v937 = vpop.f32.mrb[0].mxu0
        %v938 = vadd.f32 %v821, %v937
        %v939 = vpop.f32.mrb[0].mxu0
        %v940 = vpop.f32.mrb[0].mxu0
        %v941 = vadd.f32 %v821, %v940
        %v942 = vpop.f32.mrb[0].mxu0
        %943 = vmatprep.mubr.bf16.mxu0 0
        %944 = vmatmul.mubr.bf16.gmra.mrb[0].mxu0 %v461
        %v945 = vpop.f32.mrb[0].mxu0
        %v946 = vadd.f32 %v821, %v945
        %v947 = vpop.f32.mrb[0].mxu0
        %v948 = vpop.f32.mrb[0].mxu0
        %v949 = vadd.f32 %v821, %v948
        %v950 = vpop.f32.mrb[0].mxu0
        %951 = vmatprep.mubr.bf16.mxu0 0
        %952 = vmatmul.mubr.bf16.gmra.mrb[0].mxu0 %v462
        %v953 = vpop.f32.mrb[0].mxu0
        %v954 = vadd.f32 %v821, %v953
        %v955 = vpop.f32.mrb[0].mxu0
        %v956 = vpop.f32.mrb[0].mxu0
        %v957 = vadd.f32 %v821, %v956
        %v958 = vpop.f32.mrb[0].mxu0
        %959 = vmatprep.mubr.bf16.mxu0 0
        %960 = vmatmul.mubr.bf16.gmra.mrb[0].mxu0 %v463
        %v961 = vpop.f32.mrb[0].mxu0
        %v962 = vadd.f32 %v821, %v961
        %v963 = vpop.f32.mrb[0].mxu0
        %v964 = vpop.f32.mrb[0].mxu0
        %v965 = vadd.f32 %v821, %v964
        %v966 = vpop.f32.mrb[0].mxu0
        %967 = vdwg.mxu0
        %v968 = vpack.c.bf16 %v573, %v570
        %v969 = vpack.c.bf16 %v581, %v578
        %v970 = vpack.c.bf16 %v589, %v586
        %v971 = vpack.c.bf16 %v597, %v594
        %v972 = vpack.c.bf16 %v605, %v602
        %v973 = vpack.c.bf16 %v613, %v610
        %v974 = vpack.c.bf16 %v621, %v618
        %v975 = vpack.c.bf16 %v629, %v626
        %v984 = vunpack.c.l.b16 %v968
        %v985 = vunpack.c.h.b16 %v968
        %v986 = vunpack.c.l.b16 %v969
        %v987 = vunpack.c.h.b16 %v969
        %v988 = vunpack.c.l.b16 %v970
        %v989 = vunpack.c.h.b16 %v970
        %v990 = vunpack.c.l.b16 %v971
        %v991 = vunpack.c.h.b16 %v971
        %v992 = vunpack.c.l.b16 %v972
        %v993 = vunpack.c.h.b16 %v972
        %v994 = vunpack.c.l.b16 %v973
        %v995 = vunpack.c.h.b16 %v973
        %v996 = vunpack.c.l.b16 %v974
        %v997 = vunpack.c.h.b16 %v974
        %v998 = vunpack.c.l.b16 %v975
        %v999 = vunpack.c.h.b16 %v975
        %v1000 = vpack.c.b16 %v984, %v984
        %v1001 = vpack.c.b16 %v985, %v985
        %v1002 = vpack.c.b16 %v986, %v986
        %v1003 = vpack.c.b16 %v987, %v987
        %v1004 = vpack.c.b16 %v988, %v988
        %v1005 = vpack.c.b16 %v989, %v989
        %v1006 = vpack.c.b16 %v990, %v990
        %v1007 = vpack.c.b16 %v991, %v991
        %v1008 = vpack.c.b16 %v992, %v992
        %v1009 = vpack.c.b16 %v993, %v993
        %v1010 = vpack.c.b16 %v994, %v994
        %v1011 = vpack.c.b16 %v995, %v995
        %v1012 = vpack.c.b16 %v996, %v996
        %v1013 = vpack.c.b16 %v997, %v997
        %v1014 = vpack.c.b16 %v998, %v998
        %v1015 = vpack.c.b16 %v999, %v999
        %1032 = vst [vmem:[%s420] sm:$0xf] %v1000
        %1033 = vst [vmem:[%s420 + $0x4] sm:$0xf] %v1001
        %1034 = vst [vmem:[%s420 + $0x8] sm:$0xf] %v1002
        %1035 = vst [vmem:[%s420 + $0xc] sm:$0xf] %v1003
        %1036 = vst [vmem:[%s420 + $0x10] sm:$0xf] %v1004
        %1037 = vst [vmem:[%s420 + $0x14] sm:$0xf] %v1005
        %1038 = vst [vmem:[%s420 + $0x18] sm:$0xf] %v1006
        %1039 = vst [vmem:[%s420 + $0x1c] sm:$0xf] %v1007
        %1040 = vst [vmem:[%s420 + $0x20] sm:$0xf] %v1008
        %1041 = vst [vmem:[%s420 + $0x24] sm:$0xf] %v1009
        %1042 = vst [vmem:[%s420 + $0x28] sm:$0xf] %v1010
        %1043 = vst [vmem:[%s420 + $0x2c] sm:$0xf] %v1011
        %1044 = vst [vmem:[%s420 + $0x30] sm:$0xf] %v1012
        %1045 = vst [vmem:[%s420 + $0x34] sm:$0xf] %v1013
        %1046 = vst [vmem:[%s420 + $0x38] sm:$0xf] %v1014
        %1047 = vst [vmem:[%s420 + $0x3c] sm:$0xf] %v1015
        %v1048 = vpack.c.bf16 %v741, %v738
        %v1049 = vpack.c.bf16 %v749, %v746
        %v1050 = vpack.c.bf16 %v757, %v754
        %v1051 = vpack.c.bf16 %v765, %v762
        %v1052 = vpack.c.bf16 %v773, %v770
        %v1053 = vpack.c.bf16 %v781, %v778
        %v1054 = vpack.c.bf16 %v789, %v786
        %v1055 = vpack.c.bf16 %v797, %v794
        %v1064 = vunpack.c.l.b16 %v1048
        %v1065 = vunpack.c.h.b16 %v1048
        %v1066 = vunpack.c.l.b16 %v1049
        %v1067 = vunpack.c.h.b16 %v1049
        %v1068 = vunpack.c.l.b16 %v1050
        %v1069 = vunpack.c.h.b16 %v1050
        %v1070 = vunpack.c.l.b16 %v1051
        %v1071 = vunpack.c.h.b16 %v1051
        %v1072 = vunpack.c.l.b16 %v1052
        %v1073 = vunpack.c.h.b16 %v1052
        %v1074 = vunpack.c.l.b16 %v1053
        %v1075 = vunpack.c.h.b16 %v1053
        %v1076 = vunpack.c.l.b16 %v1054
        %v1077 = vunpack.c.h.b16 %v1054
        %v1078 = vunpack.c.l.b16 %v1055
        %v1079 = vunpack.c.h.b16 %v1055
        %v1080 = vpack.c.b16 %v1064, %v1064
        %v1081 = vpack.c.b16 %v1065, %v1065
        %v1082 = vpack.c.b16 %v1066, %v1066
        %v1083 = vpack.c.b16 %v1067, %v1067
        %v1084 = vpack.c.b16 %v1068, %v1068
        %v1085 = vpack.c.b16 %v1069, %v1069
        %v1086 = vpack.c.b16 %v1070, %v1070
        %v1087 = vpack.c.b16 %v1071, %v1071
        %v1088 = vpack.c.b16 %v1072, %v1072
        %v1089 = vpack.c.b16 %v1073, %v1073
        %v1090 = vpack.c.b16 %v1074, %v1074
        %v1091 = vpack.c.b16 %v1075, %v1075
        %v1092 = vpack.c.b16 %v1076, %v1076
        %v1093 = vpack.c.b16 %v1077, %v1077
        %v1094 = vpack.c.b16 %v1078, %v1078
        %v1095 = vpack.c.b16 %v1079, %v1079
        %1112 = vst [vmem:[%s427] sm:$0xf] %v1080
        %1113 = vst [vmem:[%s427 + $0x4] sm:$0xf] %v1081
        %1114 = vst [vmem:[%s427 + $0x8] sm:$0xf] %v1082
        %1115 = vst [vmem:[%s427 + $0xc] sm:$0xf] %v1083
        %1116 = vst [vmem:[%s427 + $0x10] sm:$0xf] %v1084
        %1117 = vst [vmem:[%s427 + $0x14] sm:$0xf] %v1085
        %1118 = vst [vmem:[%s427 + $0x18] sm:$0xf] %v1086
        %1119 = vst [vmem:[%s427 + $0x1c] sm:$0xf] %v1087
        %1120 = vst [vmem:[%s427 + $0x20] sm:$0xf] %v1088
        %1121 = vst [vmem:[%s427 + $0x24] sm:$0xf] %v1089
        %1122 = vst [vmem:[%s427 + $0x28] sm:$0xf] %v1090
        %1123 = vst [vmem:[%s427 + $0x2c] sm:$0xf] %v1091
        %1124 = vst [vmem:[%s427 + $0x30] sm:$0xf] %v1092
        %1125 = vst [vmem:[%s427 + $0x34] sm:$0xf] %v1093
        %1126 = vst [vmem:[%s427 + $0x38] sm:$0xf] %v1094
        %1127 = vst [vmem:[%s427 + $0x3c] sm:$0xf] %v1095
        %v1128 = vpack.c.bf16 %v909, %v906
        %v1129 = vpack.c.bf16 %v917, %v914
        %v1130 = vpack.c.bf16 %v925, %v922
        %v1131 = vpack.c.bf16 %v933, %v930
        %v1132 = vpack.c.bf16 %v941, %v938
        %v1133 = vpack.c.bf16 %v949, %v946
        %v1134 = vpack.c.bf16 %v957, %v954
        %v1135 = vpack.c.bf16 %v965, %v962
        %v1144 = vunpack.c.l.b16 %v1128
        %v1145 = vunpack.c.h.b16 %v1128
        %v1146 = vunpack.c.l.b16 %v1129
        %v1147 = vunpack.c.h.b16 %v1129
        %v1148 = vunpack.c.l.b16 %v1130
        %v1149 = vunpack.c.h.b16 %v1130
        %v1150 = vunpack.c.l.b16 %v1131
        %v1151 = vunpack.c.h.b16 %v1131
        %v1152 = vunpack.c.l.b16 %v1132
        %v1153 = vunpack.c.h.b16 %v1132
        %v1154 = vunpack.c.l.b16 %v1133
        %v1155 = vunpack.c.h.b16 %v1133
        %v1156 = vunpack.c.l.b16 %v1134
        %v1157 = vunpack.c.h.b16 %v1134
        %v1158 = vunpack.c.l.b16 %v1135
        %v1159 = vunpack.c.h.b16 %v1135
        %v1160 = vpack.c.b16 %v1144, %v1144
        %v1161 = vpack.c.b16 %v1145, %v1145
        %v1162 = vpack.c.b16 %v1146, %v1146
        %v1163 = vpack.c.b16 %v1147, %v1147
        %v1164 = vpack.c.b16 %v1148, %v1148
        %v1165 = vpack.c.b16 %v1149, %v1149
        %v1166 = vpack.c.b16 %v1150, %v1150
        %v1167 = vpack.c.b16 %v1151, %v1151
        %v1168 = vpack.c.b16 %v1152, %v1152
        %v1169 = vpack.c.b16 %v1153, %v1153
        %v1170 = vpack.c.b16 %v1154, %v1154
        %v1171 = vpack.c.b16 %v1155, %v1155
        %v1172 = vpack.c.b16 %v1156, %v1156
        %v1173 = vpack.c.b16 %v1157, %v1157
        %v1174 = vpack.c.b16 %v1158, %v1158
        %v1175 = vpack.c.b16 %v1159, %v1159
        %1192 = vst [vmem:[%s434] sm:$0xf] %v1160
        %1193 = vst [vmem:[%s434 + $0x4] sm:$0xf] %v1161
        %1194 = vst [vmem:[%s434 + $0x8] sm:$0xf] %v1162
        %1195 = vst [vmem:[%s434 + $0xc] sm:$0xf] %v1163
        %1196 = vst [vmem:[%s434 + $0x10] sm:$0xf] %v1164
        %1197 = vst [vmem:[%s434 + $0x14] sm:$0xf] %v1165
        %1198 = vst [vmem:[%s434 + $0x18] sm:$0xf] %v1166
        %1199 = vst [vmem:[%s434 + $0x1c] sm:$0xf] %v1167
        %1200 = vst [vmem:[%s434 + $0x20] sm:$0xf] %v1168
        %1201 = vst [vmem:[%s434 + $0x24] sm:$0xf] %v1169
        %1202 = vst [vmem:[%s434 + $0x28] sm:$0xf] %v1170
        %1203 = vst [vmem:[%s434 + $0x2c] sm:$0xf] %v1171
        %1204 = vst [vmem:[%s434 + $0x30] sm:$0xf] %v1172
        %1205 = vst [vmem:[%s434 + $0x34] sm:$0xf] %v1173
        %1206 = vst [vmem:[%s434 + $0x38] sm:$0xf] %v1174
        %1207 = vst [vmem:[%s434 + $0x3c] sm:$0xf] %v1175
        %s1208 = sand.u32 %s208, 1
        %s1209 = scalar_lea.sflag [#allocation4], %s1208
        %s1210 = sand.u32 %s208, 1
        %s1211 = smul.addr %s1210, 64
        %s1212 = scalar_lea.vmem [#allocation10], %s1211
        %s1213 = sand.u32 %s32, 1
        %s1214 = scalar_lea.sflag [#allocation12], %s1213
        %s1215 = sand.u32 %s236, 1
        %s1216 = smul.addr %s1215, 64
        %s1217 = scalar_lea.vmem [#allocation11], %s1216
        %s1218 = sand.u32 %s32, 1
        %s1219 = scalar_lea.sflag [#allocation12], %s1218
        %s1220 = sand.u32 %s264, 1
        %s1221 = smul.addr %s1220, 64
        %s1222 = scalar_lea.vmem [#allocation13], %s1221
        // Predicated region
        $region65: #{tpu_custom_call.1} parent=47 // pred_check
          %p1223 = pneg %p218
        $region66: #{tpu_custom_call.1} parent=47 // pred_check_branch
          %1225 = sbr.rel (%p1223) target = $region68
        $region67: #{tpu_custom_call.1} parent=47 // pred_region
          %s1226 = smul.u32 16, %s37
          %s1228 = ssub.s32 1024, 1024
          %1229 = vsyncadd %s1209, %s1228
          %s1230 = smul.addr %s36, 16
          %s1231 = sadd.s32 %s1226, %s1230
          %s1232 = smul.addr %s1231, 64
          %s1233 = scalar_lea.hbm %s7, %s1232
          %s1234 = sshll.u32 %s1212, 4
          %s1235 = int_to_ptr.vmem [resolvable:$true] %s1234
          %1240 = dma.vmem_to_hbm [thread:$0]  %s1235, 1024, %s1233, %s1209, 64, 64, 4
        $region68: #{tpu_custom_call.1} parent=47 // pred_fallthru
          _
        // Predicated region
        $region69: #{tpu_custom_call.1} parent=47 // pred_check
          %p1241 = pneg %p246
        $region70: #{tpu_custom_call.1} parent=47 // pred_check_branch
          %1243 = sbr.rel (%p1241) target = $region72
        $region71: #{tpu_custom_call.1} parent=47 // pred_region
          %s1244 = smul.u32 16, %s37
          %s1246 = ssub.s32 1024, 1024
          %1247 = vsyncadd %s1214, %s1246
          %s1248 = smul.addr %s36, 16
          %s1249 = sadd.s32 %s1244, %s1248
          %s1250 = smul.addr %s1249, 64
          %s1251 = scalar_lea.hbm %s8, %s1250
          %s1252 = sshll.u32 %s1217, 4
          %s1253 = int_to_ptr.vmem [resolvable:$true] %s1252
          %1258 = dma.vmem_to_hbm [thread:$0]  %s1253, 1024, %s1251, %s1214, 64, 64, 4
        $region72: #{tpu_custom_call.1} parent=47 // pred_fallthru
          _
        // Predicated region
        $region73: #{tpu_custom_call.1} parent=47 // pred_check
          %p1259 = pneg %p274
        $region74: #{tpu_custom_call.1} parent=47 // pred_check_branch
          %1261 = sbr.rel (%p1259) target = $region76
        $region75: #{tpu_custom_call.1} parent=47 // pred_region
          %s1262 = smul.u32 16, %s37
          %s1264 = ssub.s32 1024, 1024
          %1265 = vsyncadd %s1219, %s1264
          %s1266 = smul.addr %s36, 16
          %s1267 = sadd.s32 %s1262, %s1266
          %s1268 = smul.addr %s1267, 64
          %s1269 = scalar_lea.hbm %s9, %s1268
          %s1270 = sshll.u32 %s1222, 4
          %s1271 = int_to_ptr.vmem [resolvable:$true] %s1270
          %1276 = dma.vmem_to_hbm [thread:$0]  %s1271, 1024, %s1269, %s1219, 64, 64, 4
        $region76: #{tpu_custom_call.1} parent=47 // pred_fallthru
          _
      $region48: #{tpu_custom_call.1} parent=5 // pred_fallthru
        _
      %p1277 = scmp.le.s32.totalorder 2, %s27
      // Predicated region
      $region77: #{tpu_custom_call.1} parent=5 // pred_check
        %p1278 = pneg %p1277
      $region78: #{tpu_custom_call.1} parent=5 // pred_check_branch
        %1280 = sbr.rel (%p1278) target = $region80
      $region79: #{tpu_custom_call.1} parent=5 // pred_region
        %s1281 = ssub.s32 %s27, 2
        // Predicated region
        $region81: #{tpu_custom_call.1} parent=79 // pred_check
          %p1282 = pneg %p224
        $region82: #{tpu_custom_call.1} parent=79 // pred_check_branch
          %1284 = sbr.rel (%p1282) target = $region84
        $region83: #{tpu_custom_call.1} parent=79 // pred_region
          %s1285 = sand.u32 %s209, 1
          %s1286 = scalar_lea.sflag [#allocation4], %s1285
          %s1287 = sand.u32 %s209, 1
          %s1288 = smul.addr %s1287, 64
          %s1289 = scalar_lea.vmem [#allocation10], %s1288
          %1290 = dma.done %s1286, 1024
        $region84: #{tpu_custom_call.1} parent=79 // pred_fallthru
          _
        // Predicated region
        $region85: #{tpu_custom_call.1} parent=79 // pred_check
          %p1291 = pneg %p252
        $region86: #{tpu_custom_call.1} parent=79 // pred_check_branch
          %1293 = sbr.rel (%p1291) target = $region88
        $region87: #{tpu_custom_call.1} parent=79 // pred_region
          %s1294 = sand.u32 %s33, 1
          %s1295 = scalar_lea.sflag [#allocation12], %s1294
          %s1296 = sand.u32 %s237, 1
          %s1297 = smul.addr %s1296, 64
          %s1298 = scalar_lea.vmem [#allocation11], %s1297
          %1299 = dma.done %s1295, 1024
        $region88: #{tpu_custom_call.1} parent=79 // pred_fallthru
          _
        // Predicated region
        $region89: #{tpu_custom_call.1} parent=79 // pred_check
          %p1300 = pneg %p280
        $region90: #{tpu_custom_call.1} parent=79 // pred_check_branch
          %1302 = sbr.rel (%p1300) target = $region92
        $region91: #{tpu_custom_call.1} parent=79 // pred_region
          %s1303 = sand.u32 %s33, 1
          %s1304 = scalar_lea.sflag [#allocation12], %s1303
          %s1305 = sand.u32 %s265, 1
          %s1306 = smul.addr %s1305, 64
          %s1307 = scalar_lea.vmem [#allocation13], %s1306
          %1308 = dma.done %s1304, 1024
        $region92: #{tpu_custom_call.1} parent=79 // pred_fallthru
          _
      $region80: #{tpu_custom_call.1} parent=5 // pred_fallthru
        _
    $region6: #{tpu_custom_call.1} parent=1 // loop_footer
      %s31 = sadd.s32 1, %s27
    $region7: #{tpu_custom_call.1} parent=1 // loop_footer_branch
      %26 = sbr.rel target = $region3
    $region8: #{tpu_custom_call.1} parent=1 // loop_exit
      _
    %1309 = vsyncpa [#allocation3], 1
    %s1310 = scalar_lea.sflag [#allocation3], 1
    %1311 = vsyncpa %s1310, 1
    %1312 = vsyncpa [#allocation6], 1
    %1313 = vsyncpa [#allocation9], 1
    %1314 = vsyncpa [#allocation4], 1
    %s1315 = scalar_lea.sflag [#allocation4], 1
    %1316 = vsyncpa %s1315, 1
    %1317 = vsyncpa [#allocation12], 1
    %s1318 = scalar_lea.sflag [#allocation12], 1
    %1319 = vsyncpa %s1318, 1

</llo_original>
